<compile_context>
chip_gen: v6e
topology: v6e:2x2x1
jax: 0.10.0
libtpu: 0.0.40
codegen_flags: <defaults>
</compile_context>

<pallas_src>
import jax
import jax.numpy as jnp
from jax.experimental import pallas as pl
from jax.experimental.pallas import tpu as pltpu

_LANES = 128           # default channel block = lane width
_MIN_GRID_STEPS = 4    # target >= 2 grid steps per TensorCore on 2-TC chips


def _pick_sub_rows(Wo):
    # Wo >= 16: each acc row pads to >= 32 sublanes (4 vregs) -> keep the
    # accumulator at <= 16 vregs so the MAC loop does not spill.
    return 4 if Wo >= 16 else 8


def _pick_row_blocks(Ho, bc_steps):
    """Pick (row_block, n_row_blocks) for the output-row grid axis.

    Aim for >= _MIN_GRID_STEPS total grid steps (so 2-TensorCore chips get
    >= 2 steps per core and BlockSpec double-buffering has work to overlap),
    while keeping per-step output tiles >= ~8 rows so the ~0.35 us per-step
    overhead stays amortized.
    """
    if bc_steps >= _MIN_GRID_STEPS or Ho <= 8:
        return Ho, 1
    want = pl.cdiv(_MIN_GRID_STEPS, bc_steps)
    n_rb = max(1, min(want, pl.cdiv(Ho, 8)))
    rb = pl.cdiv(Ho, n_rb)
    return rb, n_rb


def _dw_xcorr_tile_body(z_ref, x_ref, o_ref, *, Hz, Wz, Wo, CB,
                        row_block, sub_rows):
    """Depthwise valid xcorr for one (batch, channel-block, row-block) tile.

    z_ref: (Hz, Wz, CB)   x_ref: (Hx_pad, Wx, CB)   o_ref: (row_block, Wo, CB)
    """
    r = pl.program_id(2)
    row_start = r * row_block

    z32 = z_ref[...].astype(jnp.float32)
    # Pre-broadcast every z tap to a (1, Wo, CB) sublane-replicated slab ONCE
    # per grid step (hoisted out of the row-block / MAC loops).
    taps = [[jnp.broadcast_to(z32[p:p + 1, q:q + 1, :], (1, Wo, CB))
             for q in range(Wz)] for p in range(Hz)]

    for i0 in range(0, row_block, sub_rows):
        rows = min(sub_rows, row_block - i0)
        # Only the (rows + Hz - 1)-row window needed by this accumulator is
        # loaded / live (no full-height shifted copies of x).
        xwin = x_ref[pl.ds(row_start + i0, rows + Hz - 1), :, :].astype(
            jnp.float32)
        acc = jnp.zeros((rows, Wo, CB), jnp.float32)
        for q in range(Wz):
            xq = xwin[:, q:q + Wo, :]          # one sublane shift per q
            for p in range(Hz):
                # (1, Wo, CB) tap broadcasts over the leading rows axis only
                # (vreg reuse, no data movement).
                acc = acc + xq[p:p + rows, :, :] * taps[p][q]
        o_ref[i0:i0 + rows, :, :] = acc.astype(o_ref.dtype)


def _dw_xcorr_nhwc_multi(z_list, x_list, out_dtype, channel_block=_LANES):
    """Run one or more depthwise-xcorr branches in a single pallas_call (NHWC)."""
    n = len(z_list)
    B, Hz, Wz, C = z_list[0].shape
    Bx, Hx, Wx, Cx = x_list[0].shape
    assert (B, C) == (Bx, Cx), "z / x batch and channel dims must match"
    for z, x in zip(z_list, x_list):
        assert z.shape == z_list[0].shape and x.shape == x_list[0].shape
    Ho, Wo = Hx - Hz + 1, Wx - Wz + 1
    assert Ho > 0 and Wo > 0
    assert channel_block % _LANES == 0

    # Lane-dense channel blocking (production C=256 needs no padding).
    CB = channel_block
    C_pad = pl.cdiv(C, CB) * CB

    # Output-row grid axis (gives every TensorCore multiple pipelined steps).
    bc_steps = B * (C_pad // CB)
    rb, n_rb = _pick_row_blocks(Ho, bc_steps)
    Ho_pad = rb * n_rb
    Hx_pad = Ho_pad + Hz - 1           # rows the last row block may touch
    sub_rows = _pick_sub_rows(Wo)

    if C_pad != C:
        zpad = [(0, 0), (0, 0), (0, 0), (0, C_pad - C)]
        z_list = [jnp.pad(z, zpad) for z in z_list]
    if C_pad != C or Hx_pad != Hx:
        xpad = [(0, 0), (0, Hx_pad - Hx), (0, 0), (0, C_pad - C)]
        x_list = [jnp.pad(x, xpad) for x in x_list]

    def kernel(*refs):
        z_refs = refs[:n]
        x_refs = refs[n:2 * n]
        o_refs = refs[2 * n:3 * n]
        for z_ref, x_ref, o_ref in zip(z_refs, x_refs, o_refs):
            _dw_xcorr_tile_body(z_ref, x_ref, o_ref,
                                Hz=Hz, Wz=Wz, Wo=Wo, CB=CB,
                                row_block=rb, sub_rows=sub_rows)

    # z / x block indices are invariant along the row axis (r varies fastest),
    # so they are DMA'd once per (batch, channel-block), not once per row block.
    z_spec = pl.BlockSpec((None, Hz, Wz, CB), lambda b, c, r: (b, 0, 0, c))
    x_spec = pl.BlockSpec((None, Hx_pad, Wx, CB), lambda b, c, r: (b, 0, 0, c))
    o_spec = pl.BlockSpec((None, rb, Wo, CB), lambda b, c, r: (b, r, 0, c))

    outs = pl.pallas_call(
        kernel,
        out_shape=tuple(jax.ShapeDtypeStruct((B, Ho_pad, Wo, C_pad), out_dtype)
                        for _ in range(n)),
        grid=(B, C_pad // CB, n_rb),
        in_specs=[z_spec] * n + [x_spec] * n,
        out_specs=tuple(o_spec for _ in range(n)),
        compiler_params=pltpu.CompilerParams(
            dimension_semantics=("parallel", "parallel", "parallel")),
    )(*z_list, *x_list)

    if C_pad != C or Ho_pad != Ho:
        outs = tuple(o[:, :Ho, :, :C] for o in outs)
    return outs


def rpn_dw_xcorr_nhwc(z_f, x_f, out_dtype=jnp.float32, channel_block=_LANES):
    """Depthwise xcorr, NHWC end-to-end (preferred: no layout transposes).

    z_f: (B, Hz, Wz, C) template features;  x_f: (B, Hx, Wx, C) search features
    (f32 or bf16 — accumulation is always f32).
    Returns (B, Ho, Wo, C), Ho = Hx - Hz + 1, Wo = Wx - Wz + 1.
    `channel_block`: 128 (default; required on v7x so both TensorCores get
    work at B=1, C=256) or 256 (worth trying on single-TC v5e/v6e when
    B*C/128 is tiny).
    """
    (out,) = _dw_xcorr_nhwc_multi([z_f], [x_f], out_dtype, channel_block)
    return out


def rpn_dw_xcorr_fused_nhwc(z_cls, x_cls, z_loc, x_loc,
                            out_dtype=jnp.float32, channel_block=_LANES):
    """Fused cls + loc depthwise xcorr in one pallas_call (halves launch /
    pipeline-fill overhead vs. two separate calls)."""
    return _dw_xcorr_nhwc_multi([z_cls, z_loc], [x_cls, x_loc],
                                out_dtype, channel_block)


def rpn_dw_xcorr(z_f, x_f, out_dtype=jnp.float32, channel_block=_LANES):
    """PyTorch-layout (NCHW) compatibility wrapper.

    Prefer rpn_dw_xcorr_nhwc to avoid the two HBM layout transposes.
    """
    z = jnp.transpose(z_f, (0, 2, 3, 1))
    x = jnp.transpose(x_f, (0, 2, 3, 1))
    (out,) = _dw_xcorr_nhwc_multi([z], [x], out_dtype, channel_block)
    return jnp.transpose(out, (0, 3, 1, 2))


def _reference_dw_xcorr_nhwc(z, x):
    """Pure-JAX reference (NHWC) for correctness checking."""
    _, Hz, Wz, _ = z.shape
    _, Hx, Wx, _ = x.shape
    Ho, Wo = Hx - Hz + 1, Wx - Wz + 1
    out = jnp.zeros(z.shape[:1] + (Ho, Wo, z.shape[-1]), jnp.float32)
    for p in range(Hz):
        for q in range(Wz):
            out = out + (x[:, p:p + Ho, q:q + Wo, :].astype(jnp.float32)
                         * z[:, p:p + 1, q:q + 1, :].astype(jnp.float32))
    return out


if __name__ == "__main__":
    key = jax.random.PRNGKey(0)
    kz, kx, kz2, kx2 = jax.random.split(key, 4)

    # RPN.__init__ defines no weights -> nothing to initialize.
    B, C = 2, 32
    Hz = Wz = 4           # template ("kernel") spatial size
    Hx = Wx = 16          # search spatial size -> output 13x13

    # Primary NHWC path (no wrapper transposes), f32 inputs.
    z = jax.random.normal(kz, (B, Hz, Wz, C), dtype=jnp.float32)
    x = jax.random.normal(kx, (B, Hx, Wx, C), dtype=jnp.float32)
    out = jax.block_until_ready(rpn_dw_xcorr_nhwc(z, x))
    ref = _reference_dw_xcorr_nhwc(z, x)
    assert out.shape == (B, Hx - Hz + 1, Wx - Wz + 1, C), out.shape
    assert jnp.allclose(out, ref, atol=1e-4, rtol=1e-4), "NHWC mismatch vs reference"

    # bf16 inputs (halved HBM->VMEM DMA), f32 accumulation and f32 output.
    z_bf = z.astype(jnp.bfloat16)
    x_bf = x.astype(jnp.bfloat16)
    out_bf = jax.block_until_ready(rpn_dw_xcorr_nhwc(z_bf, x_bf))
    ref_bf = _reference_dw_xcorr_nhwc(z_bf, x_bf)
    assert out_bf.dtype == jnp.float32
    assert jnp.allclose(out_bf, ref_bf, atol=1e-3, rtol=1e-3), "bf16 mismatch"

    # NCHW (PyTorch-layout) compatibility wrapper.
    z_nchw = jnp.transpose(z, (0, 3, 1, 2))
    x_nchw = jnp.transpose(x, (0, 3, 1, 2))
    out_nchw = jax.block_until_ready(rpn_dw_xcorr(z_nchw, x_nchw))
    assert jnp.allclose(out_nchw, jnp.transpose(ref, (0, 3, 1, 2)),
                        atol=1e-4, rtol=1e-4), "NCHW mismatch vs reference"

    # Fused cls/loc branches (single pallas_call).
    z2 = jax.random.normal(kz2, (B, Hz, Wz, C), dtype=jnp.float32)
    x2 = jax.random.normal(kx2, (B, Hx, Wx, C), dtype=jnp.float32)
    out_cls, out_loc = jax.block_until_ready(
        rpn_dw_xcorr_fused_nhwc(z, x, z2, x2))
    ref2 = _reference_dw_xcorr_nhwc(z2, x2)
    assert jnp.allclose(out_cls, ref, atol=1e-4, rtol=1e-4), "fused cls mismatch"
    assert jnp.allclose(out_loc, ref2, atol=1e-4, rtol=1e-4), "fused loc mismatch"

    print("KERNEL_OK")
</pallas_src>

<mosaic_0001>
module attributes {stable_mosaic.version = 11 : i64} {
  func.func @kernel(%arg0: i32, %arg1: i32, %arg2: i32, %arg3: memref<1x4x4x128xf32, #tpu.memory_space<vmem>>, %arg4: memref<1x17x16x128xf32, #tpu.memory_space<vmem>>, %arg5: memref<1x7x13x128xf32, #tpu.memory_space<vmem>>) attributes {dimension_semantics = [#tpu.dimension_semantics<parallel>, #tpu.dimension_semantics<parallel>, #tpu.dimension_semantics<parallel>], iteration_bounds = array<i64: 2, 1, 2>, scalar_prefetch = 0 : i64, scratch_operands = 0 : i64, tpu.core_type = #tpu.core_type<tc>, window_params = [{transform_indices = @transform_0, window_bounds = array<i64: 1, 4, 4, 128>}, {transform_indices = @transform_1, window_bounds = array<i64: 1, 17, 16, 128>}, {transform_indices = @transform_2, window_bounds = array<i64: 1, 7, 13, 128>}]} {
    %c7_i32 = arith.constant 7 : i32
    %0 = arith.muli %arg2, %c7_i32 : i32
    %c0 = arith.constant 0 : index
    %c0_0 = arith.constant 0 : index
    %c0_1 = arith.constant 0 : index
    %c0_2 = arith.constant 0 : index
    %1 = vector.load %arg3[%c0, %c0_0, %c0_1, %c0_2] : memref<1x4x4x128xf32, #tpu.memory_space<vmem>>, vector<1x4x4x128xf32>
    %2 = vector.shape_cast %1 : vector<1x4x4x128xf32> to vector<4x4x128xf32>
    %3 = vector.extract_strided_slice %2 {offsets = [0, 0, 0], sizes = [1, 1, 128], strides = [1, 1, 1]} : vector<4x4x128xf32> to vector<1x1x128xf32>
    %4 = vector.shape_cast %3 : vector<1x1x128xf32> to vector<1x1x128xf32>
    %5 = vector.broadcast %4 : vector<1x1x128xf32> to vector<1x13x128xf32>
    %6 = vector.extract_strided_slice %2 {offsets = [0, 1, 0], sizes = [1, 1, 128], strides = [1, 1, 1]} : vector<4x4x128xf32> to vector<1x1x128xf32>
    %7 = vector.shape_cast %6 : vector<1x1x128xf32> to vector<1x1x128xf32>
    %8 = vector.broadcast %7 : vector<1x1x128xf32> to vector<1x13x128xf32>
    %9 = vector.extract_strided_slice %2 {offsets = [0, 2, 0], sizes = [1, 1, 128], strides = [1, 1, 1]} : vector<4x4x128xf32> to vector<1x1x128xf32>
    %10 = vector.shape_cast %9 : vector<1x1x128xf32> to vector<1x1x128xf32>
    %11 = vector.broadcast %10 : vector<1x1x128xf32> to vector<1x13x128xf32>
    %12 = vector.extract_strided_slice %2 {offsets = [0, 3, 0], sizes = [1, 1, 128], strides = [1, 1, 1]} : vector<4x4x128xf32> to vector<1x1x128xf32>
    %13 = vector.shape_cast %12 : vector<1x1x128xf32> to vector<1x1x128xf32>
    %14 = vector.broadcast %13 : vector<1x1x128xf32> to vector<1x13x128xf32>
    %15 = vector.extract_strided_slice %2 {offsets = [1, 0, 0], sizes = [1, 1, 128], strides = [1, 1, 1]} : vector<4x4x128xf32> to vector<1x1x128xf32>
    %16 = vector.shape_cast %15 : vector<1x1x128xf32> to vector<1x1x128xf32>
    %17 = vector.broadcast %16 : vector<1x1x128xf32> to vector<1x13x128xf32>
    %18 = vector.extract_strided_slice %2 {offsets = [1, 1, 0], sizes = [1, 1, 128], strides = [1, 1, 1]} : vector<4x4x128xf32> to vector<1x1x128xf32>
    %19 = vector.shape_cast %18 : vector<1x1x128xf32> to vector<1x1x128xf32>
    %20 = vector.broadcast %19 : vector<1x1x128xf32> to vector<1x13x128xf32>
    %21 = vector.extract_strided_slice %2 {offsets = [1, 2, 0], sizes = [1, 1, 128], strides = [1, 1, 1]} : vector<4x4x128xf32> to vector<1x1x128xf32>
    %22 = vector.shape_cast %21 : vector<1x1x128xf32> to vector<1x1x128xf32>
    %23 = vector.broadcast %22 : vector<1x1x128xf32> to vector<1x13x128xf32>
    %24 = vector.extract_strided_slice %2 {offsets = [1, 3, 0], sizes = [1, 1, 128], strides = [1, 1, 1]} : vector<4x4x128xf32> to vector<1x1x128xf32>
    %25 = vector.shape_cast %24 : vector<1x1x128xf32> to vector<1x1x128xf32>
    %26 = vector.broadcast %25 : vector<1x1x128xf32> to vector<1x13x128xf32>
    %27 = vector.extract_strided_slice %2 {offsets = [2, 0, 0], sizes = [1, 1, 128], strides = [1, 1, 1]} : vector<4x4x128xf32> to vector<1x1x128xf32>
    %28 = vector.shape_cast %27 : vector<1x1x128xf32> to vector<1x1x128xf32>
    %29 = vector.broadcast %28 : vector<1x1x128xf32> to vector<1x13x128xf32>
    %30 = vector.extract_strided_slice %2 {offsets = [2, 1, 0], sizes = [1, 1, 128], strides = [1, 1, 1]} : vector<4x4x128xf32> to vector<1x1x128xf32>
    %31 = vector.shape_cast %30 : vector<1x1x128xf32> to vector<1x1x128xf32>
    %32 = vector.broadcast %31 : vector<1x1x128xf32> to vector<1x13x128xf32>
    %33 = vector.extract_strided_slice %2 {offsets = [2, 2, 0], sizes = [1, 1, 128], strides = [1, 1, 1]} : vector<4x4x128xf32> to vector<1x1x128xf32>
    %34 = vector.shape_cast %33 : vector<1x1x128xf32> to vector<1x1x128xf32>
    %35 = vector.broadcast %34 : vector<1x1x128xf32> to vector<1x13x128xf32>
    %36 = vector.extract_strided_slice %2 {offsets = [2, 3, 0], sizes = [1, 1, 128], strides = [1, 1, 1]} : vector<4x4x128xf32> to vector<1x1x128xf32>
    %37 = vector.shape_cast %36 : vector<1x1x128xf32> to vector<1x1x128xf32>
    %38 = vector.broadcast %37 : vector<1x1x128xf32> to vector<1x13x128xf32>
    %39 = vector.extract_strided_slice %2 {offsets = [3, 0, 0], sizes = [1, 1, 128], strides = [1, 1, 1]} : vector<4x4x128xf32> to vector<1x1x128xf32>
    %40 = vector.shape_cast %39 : vector<1x1x128xf32> to vector<1x1x128xf32>
    %41 = vector.broadcast %40 : vector<1x1x128xf32> to vector<1x13x128xf32>
    %42 = vector.extract_strided_slice %2 {offsets = [3, 1, 0], sizes = [1, 1, 128], strides = [1, 1, 1]} : vector<4x4x128xf32> to vector<1x1x128xf32>
    %43 = vector.shape_cast %42 : vector<1x1x128xf32> to vector<1x1x128xf32>
    %44 = vector.broadcast %43 : vector<1x1x128xf32> to vector<1x13x128xf32>
    %45 = vector.extract_strided_slice %2 {offsets = [3, 2, 0], sizes = [1, 1, 128], strides = [1, 1, 1]} : vector<4x4x128xf32> to vector<1x1x128xf32>
    %46 = vector.shape_cast %45 : vector<1x1x128xf32> to vector<1x1x128xf32>
    %47 = vector.broadcast %46 : vector<1x1x128xf32> to vector<1x13x128xf32>
    %48 = vector.extract_strided_slice %2 {offsets = [3, 3, 0], sizes = [1, 1, 128], strides = [1, 1, 1]} : vector<4x4x128xf32> to vector<1x1x128xf32>
    %49 = vector.shape_cast %48 : vector<1x1x128xf32> to vector<1x1x128xf32>
    %50 = vector.broadcast %49 : vector<1x1x128xf32> to vector<1x13x128xf32>
    %c0_i32 = arith.constant 0 : i32
    %51 = arith.addi %0, %c0_i32 : i32
    %c0_3 = arith.constant 0 : index
    %52 = arith.index_cast %51 : i32 to index
    %c0_4 = arith.constant 0 : index
    %c0_5 = arith.constant 0 : index
    %53 = vector.load %arg4[%c0_3, %52, %c0_4, %c0_5] : memref<1x17x16x128xf32, #tpu.memory_space<vmem>>, vector<1x10x16x128xf32>
    %54 = vector.shape_cast %53 : vector<1x10x16x128xf32> to vector<10x16x128xf32>
    %cst = arith.constant 0.000000e+00 : f32
    %55 = vector.broadcast %cst : f32 to vector<7x13x128xf32>
    %56 = vector.extract_strided_slice %54 {offsets = [0, 0, 0], sizes = [10, 13, 128], strides = [1, 1, 1]} : vector<10x16x128xf32> to vector<10x13x128xf32>
    %57 = vector.extract_strided_slice %56 {offsets = [0, 0, 0], sizes = [7, 13, 128], strides = [1, 1, 1]} : vector<10x13x128xf32> to vector<7x13x128xf32>
    %58 = vector.broadcast %5 : vector<1x13x128xf32> to vector<7x13x128xf32>
    %59 = arith.mulf %57, %58 : vector<7x13x128xf32>
    %60 = arith.addf %55, %59 : vector<7x13x128xf32>
    %61 = vector.extract_strided_slice %56 {offsets = [1, 0, 0], sizes = [7, 13, 128], strides = [1, 1, 1]} : vector<10x13x128xf32> to vector<7x13x128xf32>
    %62 = vector.broadcast %17 : vector<1x13x128xf32> to vector<7x13x128xf32>
    %63 = arith.mulf %61, %62 : vector<7x13x128xf32>
    %64 = arith.addf %60, %63 : vector<7x13x128xf32>
    %65 = vector.extract_strided_slice %56 {offsets = [2, 0, 0], sizes = [7, 13, 128], strides = [1, 1, 1]} : vector<10x13x128xf32> to vector<7x13x128xf32>
    %66 = vector.broadcast %29 : vector<1x13x128xf32> to vector<7x13x128xf32>
    %67 = arith.mulf %65, %66 : vector<7x13x128xf32>
    %68 = arith.addf %64, %67 : vector<7x13x128xf32>
    %69 = vector.extract_strided_slice %56 {offsets = [3, 0, 0], sizes = [7, 13, 128], strides = [1, 1, 1]} : vector<10x13x128xf32> to vector<7x13x128xf32>
    %70 = vector.broadcast %41 : vector<1x13x128xf32> to vector<7x13x128xf32>
    %71 = arith.mulf %69, %70 : vector<7x13x128xf32>
    %72 = arith.addf %68, %71 : vector<7x13x128xf32>
    %73 = vector.extract_strided_slice %54 {offsets = [0, 1, 0], sizes = [10, 13, 128], strides = [1, 1, 1]} : vector<10x16x128xf32> to vector<10x13x128xf32>
    %74 = vector.extract_strided_slice %73 {offsets = [0, 0, 0], sizes = [7, 13, 128], strides = [1, 1, 1]} : vector<10x13x128xf32> to vector<7x13x128xf32>
    %75 = vector.broadcast %8 : vector<1x13x128xf32> to vector<7x13x128xf32>
    %76 = arith.mulf %74, %75 : vector<7x13x128xf32>
    %77 = arith.addf %72, %76 : vector<7x13x128xf32>
    %78 = vector.extract_strided_slice %73 {offsets = [1, 0, 0], sizes = [7, 13, 128], strides = [1, 1, 1]} : vector<10x13x128xf32> to vector<7x13x128xf32>
    %79 = vector.broadcast %20 : vector<1x13x128xf32> to vector<7x13x128xf32>
    %80 = arith.mulf %78, %79 : vector<7x13x128xf32>
    %81 = arith.addf %77, %80 : vector<7x13x128xf32>
    %82 = vector.extract_strided_slice %73 {offsets = [2, 0, 0], sizes = [7, 13, 128], strides = [1, 1, 1]} : vector<10x13x128xf32> to vector<7x13x128xf32>
    %83 = vector.broadcast %32 : vector<1x13x128xf32> to vector<7x13x128xf32>
    %84 = arith.mulf %82, %83 : vector<7x13x128xf32>
    %85 = arith.addf %81, %84 : vector<7x13x128xf32>
    %86 = vector.extract_strided_slice %73 {offsets = [3, 0, 0], sizes = [7, 13, 128], strides = [1, 1, 1]} : vector<10x13x128xf32> to vector<7x13x128xf32>
    %87 = vector.broadcast %44 : vector<1x13x128xf32> to vector<7x13x128xf32>
    %88 = arith.mulf %86, %87 : vector<7x13x128xf32>
    %89 = arith.addf %85, %88 : vector<7x13x128xf32>
    %90 = vector.extract_strided_slice %54 {offsets = [0, 2, 0], sizes = [10, 13, 128], strides = [1, 1, 1]} : vector<10x16x128xf32> to vector<10x13x128xf32>
    %91 = vector.extract_strided_slice %90 {offsets = [0, 0, 0], sizes = [7, 13, 128], strides = [1, 1, 1]} : vector<10x13x128xf32> to vector<7x13x128xf32>
    %92 = vector.broadcast %11 : vector<1x13x128xf32> to vector<7x13x128xf32>
    %93 = arith.mulf %91, %92 : vector<7x13x128xf32>
    %94 = arith.addf %89, %93 : vector<7x13x128xf32>
    %95 = vector.extract_strided_slice %90 {offsets = [1, 0, 0], sizes = [7, 13, 128], strides = [1, 1, 1]} : vector<10x13x128xf32> to vector<7x13x128xf32>
    %96 = vector.broadcast %23 : vector<1x13x128xf32> to vector<7x13x128xf32>
    %97 = arith.mulf %95, %96 : vector<7x13x128xf32>
    %98 = arith.addf %94, %97 : vector<7x13x128xf32>
    %99 = vector.extract_strided_slice %90 {offsets = [2, 0, 0], sizes = [7, 13, 128], strides = [1, 1, 1]} : vector<10x13x128xf32> to vector<7x13x128xf32>
    %100 = vector.broadcast %35 : vector<1x13x128xf32> to vector<7x13x128xf32>
    %101 = arith.mulf %99, %100 : vector<7x13x128xf32>
    %102 = arith.addf %98, %101 : vector<7x13x128xf32>
    %103 = vector.extract_strided_slice %90 {offsets = [3, 0, 0], sizes = [7, 13, 128], strides = [1, 1, 1]} : vector<10x13x128xf32> to vector<7x13x128xf32>
    %104 = vector.broadcast %47 : vector<1x13x128xf32> to vector<7x13x128xf32>
    %105 = arith.mulf %103, %104 : vector<7x13x128xf32>
    %106 = arith.addf %102, %105 : vector<7x13x128xf32>
    %107 = vector.extract_strided_slice %54 {offsets = [0, 3, 0], sizes = [10, 13, 128], strides = [1, 1, 1]} : vector<10x16x128xf32> to vector<10x13x128xf32>
    %108 = vector.extract_strided_slice %107 {offsets = [0, 0, 0], sizes = [7, 13, 128], strides = [1, 1, 1]} : vector<10x13x128xf32> to vector<7x13x128xf32>
    %109 = vector.broadcast %14 : vector<1x13x128xf32> to vector<7x13x128xf32>
    %110 = arith.mulf %108, %109 : vector<7x13x128xf32>
    %111 = arith.addf %106, %110 : vector<7x13x128xf32>
    %112 = vector.extract_strided_slice %107 {offsets = [1, 0, 0], sizes = [7, 13, 128], strides = [1, 1, 1]} : vector<10x13x128xf32> to vector<7x13x128xf32>
    %113 = vector.broadcast %26 : vector<1x13x128xf32> to vector<7x13x128xf32>
    %114 = arith.mulf %112, %113 : vector<7x13x128xf32>
    %115 = arith.addf %111, %114 : vector<7x13x128xf32>
    %116 = vector.extract_strided_slice %107 {offsets = [2, 0, 0], sizes = [7, 13, 128], strides = [1, 1, 1]} : vector<10x13x128xf32> to vector<7x13x128xf32>
    %117 = vector.broadcast %38 : vector<1x13x128xf32> to vector<7x13x128xf32>
    %118 = arith.mulf %116, %117 : vector<7x13x128xf32>
    %119 = arith.addf %115, %118 : vector<7x13x128xf32>
    %120 = vector.extract_strided_slice %107 {offsets = [3, 0, 0], sizes = [7, 13, 128], strides = [1, 1, 1]} : vector<10x13x128xf32> to vector<7x13x128xf32>
    %121 = vector.broadcast %50 : vector<1x13x128xf32> to vector<7x13x128xf32>
    %122 = arith.mulf %120, %121 : vector<7x13x128xf32>
    %123 = arith.addf %119, %122 : vector<7x13x128xf32>
    %c0_6 = arith.constant 0 : index
    %c0_7 = arith.constant 0 : index
    %c0_8 = arith.constant 0 : index
    %c0_9 = arith.constant 0 : index
    %124 = vector.load %arg5[%c0_6, %c0_7, %c0_8, %c0_9] : memref<1x7x13x128xf32, #tpu.memory_space<vmem>>, vector<1x7x13x128xf32>
    %125 = vector.shape_cast %124 : vector<1x7x13x128xf32> to vector<7x13x128xf32>
    %126 = vector.shape_cast %123 : vector<7x13x128xf32> to vector<1x7x13x128xf32>
    tpu.vector_store %arg5[%c0_6, %c0_7, %c0_8, %c0_9], %126 {strides = array<i32>} : memref<1x7x13x128xf32, #tpu.memory_space<vmem>>, vector<1x7x13x128xf32>,
    return
  }
  func.func @transform_0(%arg0: i32, %arg1: i32, %arg2: i32) -> (i32, i32, i32, i32) {
    %c0_i32 = arith.constant 0 : i32
    %c0_i32_0 = arith.constant 0 : i32
    %c0_i32_1 = arith.constant 0 : i32
    return %arg0, %c0_i32, %c0_i32_0, %arg1 : i32, i32, i32, i32
  }
  func.func @transform_1(%arg0: i32, %arg1: i32, %arg2: i32) -> (i32, i32, i32, i32) {
    %c0_i32 = arith.constant 0 : i32
    %c0_i32_0 = arith.constant 0 : i32
    %c0_i32_1 = arith.constant 0 : i32
    return %arg0, %c0_i32, %c0_i32_0, %arg1 : i32, i32, i32, i32
  }
  func.func @transform_2(%arg0: i32, %arg1: i32, %arg2: i32) -> (i32, i32, i32, i32) {
    %c0_i32 = arith.constant 0 : i32
    %c0_i32_0 = arith.constant 0 : i32
    return %arg0, %arg2, %c0_i32, %arg1 : i32, i32, i32, i32
  }
}

</mosaic_0001>

<llo_original>
// kernel: tpu_custom_call.1
$region0: #{tpu_custom_call.1}
  #allocation0 [shape = 'u32[]', space=smem, size = 0x4, offset = 0x4, fixed_abs, tag = 'smem constant byte address 0x4 - core index']
  #allocation1 [shape = 'u32[144,128]{1,0:T(1,128)}', space=vmem, size = 0x12000, scoped, tag = 'internal scratch']
  %s0 = inlined_call_operand.hbm [shape: f32[2,4,4,128], index: 0, kind: input, shape index: {}]
  %s1 = inlined_call_operand.hbm [shape: f32[2,17,16,128], index: 1, kind: input, shape index: {}]
  %s2 = inlined_call_operand.vmem [shape: f32[2,14,13,128], index: 2, kind: output, shape index: {}]
  %s3 = sld [smem:[#allocation0]]
  $region49: #{tpu_custom_call.1} parent=0
    _
  %s5 = ssub.s32 1, %s3
  %s6 = scalar_select 0, %s5, %s3
  $region1: #{tpu_custom_call.1} parent=0
    #allocation2 [shape = 'u8[16384]{0}', space=vmem, size = 0x4000, scoped, tag = 'input window, operand 0']
    #allocation3 [shape = 's32[2]{0}', space=sflag, size = 0x8, scoped, tag = 'scoped memory for tpu_custom_call.1']
    #allocation4 [shape = 'u8[278528]{0}', space=vmem, size = 0x44000, scoped, tag = 'input window, operand 1']
    #allocation5 [shape = 's32[2]{0}', space=sflag, size = 0x8, scoped, tag = 'scoped memory for tpu_custom_call.1']
    %7 = vsyncpa [#allocation3], 0
    %s8 = scalar_lea.sflag [#allocation3], 1
    %9 = vsyncpa %s8, 0
    %10 = vsyncpa [#allocation5], 0
    %s11 = scalar_lea.sflag [#allocation5], 1
    %12 = vsyncpa %s11, 0
    loop: start=0, step=1, limit=6
    $region2: #{tpu_custom_call.1} parent=1 // loop_pre_header
      _
    $region3: #{tpu_custom_call.1} parent=1 // loop_header
      %s14 = sphi 0, %s18
      %p15 = scmp.ge.s32.totalorder %s14, 6
      %s21 = sphi 0, %s40
      %s22 = sphi 0, %s36
      %s23 = sphi 0, %s32
      %s24 = sphi 0, %s21
      %s25 = sphi 0, %s22
      %s26 = sphi 0, %s23
      %s27 = sphi 0, %s24
      %s28 = sphi 0, %s25
      %s29 = sphi 0, %s26
      %s45 = sphi 0, %s47
      %s48 = sphi 0, %s45
      %s49 = sphi 0, %s48
      %s65 = sphi 0, %s49
      %s73 = sphi 0, %s75
      %s76 = sphi 0, %s73
      %s77 = sphi 0, %s76
      %s93 = sphi 0, %s77
      %s103 = sphi 0, %s105
      %s106 = sphi 0, %s103
      %s107 = sphi 0, %s106
      %s123 = sphi 0, %s107
    $region4: #{tpu_custom_call.1} parent=1 // loop_header_branch
      %17 = sbr.rel (%p15) target = $region8
    $region5: #{tpu_custom_call.1} parent=1 // loop_body
      %s19 = ssub.s32 %s14, 1
      %s20 = ssub.s32 %s14, 2
      %s30 = sadd.s32 1, %s23
      %p31 = scmp.ge.s32.totalorder %s30, 2
      %s32 = scalar_select %p31, 0, %s30
      %s33 = sadd.s32 1, %s22
      %s34 = scalar_select %p31, %s33, %s22
      %p35 = scmp.ge.s32.totalorder %s34, 1
      %s36 = scalar_select %p35, 0, %s34
      %s37 = sadd.s32 1, %s21
      %s38 = scalar_select %p35, %s37, %s21
      %p39 = scmp.ge.s32.totalorder %s38, 2
      %s40 = scalar_select %p39, 0, %s38
      %s41 = ssub.s32 %s21, %s40
      %s42 = ssub.s32 %s22, %s36
      %s43 = sor.u32 %s41, %s42
      %p44 = scmp.eq.s32.totalorder %s43, 0
      %s46 = sadd.s32 %s45, 1
      %s47 = scalar_select %p44, %s45, %s46
      %p50 = pneg %p44
      %p51 = scmp.eq.s32.totalorder %s14, 3
      %p52 = por %p50, %p51
      %p53 = scmp.ne.s32.totalorder %s45, %s48
      %p54 = scmp.eq.s32.totalorder %s14, 0
      %p55 = por %p53, %p54
      %p56 = scmp.ne.s32.totalorder %s45, %s48
      %p57 = scmp.eq.s32.totalorder %s19, 3
      %p58 = por %p56, %p57
      %p59 = scmp.ne.s32.totalorder %s48, %s49
      %p60 = scmp.eq.s32.totalorder %s19, 0
      %p61 = por %p59, %p60
      %p62 = scmp.ne.s32.totalorder %s48, %s49
      %p63 = scmp.eq.s32.totalorder %s20, 3
      %p64 = por %p62, %p63
      %p66 = scmp.ne.s32.totalorder %s49, %s65
      %p67 = scmp.eq.s32.totalorder %s20, 0
      %p68 = por %p66, %p67
      %s69 = ssub.s32 %s21, %s40
      %s70 = ssub.s32 %s22, %s36
      %s71 = sor.u32 %s69, %s70
      %p72 = scmp.eq.s32.totalorder %s71, 0
      %s74 = sadd.s32 %s73, 1
      %s75 = scalar_select %p72, %s73, %s74
      %p78 = pneg %p72
      %p79 = scmp.eq.s32.totalorder %s14, 3
      %p80 = por %p78, %p79
      %p81 = scmp.ne.s32.totalorder %s73, %s76
      %p82 = scmp.eq.s32.totalorder %s14, 0
      %p83 = por %p81, %p82
      %p84 = scmp.ne.s32.totalorder %s73, %s76
      %p85 = scmp.eq.s32.totalorder %s19, 3
      %p86 = por %p84, %p85
      %p87 = scmp.ne.s32.totalorder %s76, %s77
      %p88 = scmp.eq.s32.totalorder %s19, 0
      %p89 = por %p87, %p88
      %p90 = scmp.ne.s32.totalorder %s76, %s77
      %p91 = scmp.eq.s32.totalorder %s20, 3
      %p92 = por %p90, %p91
      %p94 = scmp.ne.s32.totalorder %s77, %s93
      %p95 = scmp.eq.s32.totalorder %s20, 0
      %p96 = por %p94, %p95
      %s97 = ssub.s32 %s21, %s40
      %s98 = ssub.s32 %s23, %s32
      %s99 = sor.u32 %s97, %s98
      %s100 = ssub.s32 %s22, %s36
      %s101 = sor.u32 %s99, %s100
      %p102 = scmp.eq.s32.totalorder %s101, 0
      %s104 = sadd.s32 %s103, 1
      %s105 = scalar_select %p102, %s103, %s104
      %p108 = pneg %p102
      %p109 = scmp.eq.s32.totalorder %s14, 3
      %p110 = por %p108, %p109
      %p111 = scmp.ne.s32.totalorder %s103, %s106
      %p112 = scmp.eq.s32.totalorder %s14, 0
      %p113 = por %p111, %p112
      %p114 = scmp.ne.s32.totalorder %s103, %s106
      %p115 = scmp.eq.s32.totalorder %s19, 3
      %p116 = por %p114, %p115
      %p117 = scmp.ne.s32.totalorder %s106, %s107
      %p118 = scmp.eq.s32.totalorder %s19, 0
      %p119 = por %p117, %p118
      %p120 = scmp.ne.s32.totalorder %s106, %s107
      %p121 = scmp.eq.s32.totalorder %s20, 3
      %p122 = por %p120, %p121
      %p124 = scmp.ne.s32.totalorder %s107, %s123
      %p125 = scmp.eq.s32.totalorder %s20, 0
      %p126 = por %p124, %p125
      %p127 = scmp.le.s32.totalorder 1, %s14
      %p128 = scmp.lt.s32.totalorder %s14, 5
      %p129 = pnand %p127, %p128
      %p130 = pneg %p129
      // Predicated region
      $region9: #{tpu_custom_call.1} parent=5 // pred_check
        _
      $region10: #{tpu_custom_call.1} parent=5 // pred_check_branch
        %132 = sbr.rel (%p129) target = $region12
      $region11: #{tpu_custom_call.1} parent=5 // pred_region
        %s133 = ssub.s32 %s14, 1
      $region12: #{tpu_custom_call.1} parent=5 // pred_fallthru
        _
      %p134 = scmp.lt.s32.totalorder %s14, 4
      // Predicated region
      $region13: #{tpu_custom_call.1} parent=5 // pred_check
        %p135 = pneg %p134
      $region14: #{tpu_custom_call.1} parent=5 // pred_check_branch
        %137 = sbr.rel (%p135) target = $region16
      $region15: #{tpu_custom_call.1} parent=5 // pred_region
        // Predicated region
        $region17: #{tpu_custom_call.1} parent=15 // pred_check
          %p138 = pneg %p55
        $region18: #{tpu_custom_call.1} parent=15 // pred_check_branch
          %140 = sbr.rel (%p138) target = $region20
        $region19: #{tpu_custom_call.1} parent=15 // pred_region
          %s141 = sand.u32 %s45, 1
          %s142 = scalar_lea.sflag [#allocation3], %s141
          %s143 = sand.u32 %s45, 1
          %s144 = smul.addr %s143, 16
          %s145 = scalar_lea.vmem [#allocation2], %s144
          %s147 = ssub.s32 256, 256
          %148 = vsyncadd %s142, %s147
          %s149 = smul.addr %s21, 4
          %s150 = sadd.s32 %s22, %s149
          %s151 = smul.addr %s150, 64
          %s152 = scalar_lea.hbm %s0, %s151
          %s153 = sshll.u32 %s145, 4
          %s154 = int_to_ptr.vmem [resolvable:$true] %s153
          %159 = dma.hbm_to_vmem [thread:$0]  %s152, 256, %s154, %s142, 64, 64, 4
        $region20: #{tpu_custom_call.1} parent=15 // pred_fallthru
          _
        // Predicated region
        $region21: #{tpu_custom_call.1} parent=15 // pred_check
          %p160 = pneg %p83
        $region22: #{tpu_custom_call.1} parent=15 // pred_check_branch
          %162 = sbr.rel (%p160) target = $region24
        $region23: #{tpu_custom_call.1} parent=15 // pred_region
          %s163 = sand.u32 %s73, 1
          %s164 = scalar_lea.sflag [#allocation5], %s163
          %s165 = sand.u32 %s73, 1
          %s166 = smul.addr %s165, 272
          %s167 = scalar_lea.vmem [#allocation4], %s166
          %s169 = ssub.s32 4352, 4352
          %170 = vsyncadd %s164, %s169
          %s171 = smul.addr %s21, 34
          %s172 = sadd.s32 %s22, %s171
          %s173 = smul.addr %s172, 128
          %s174 = scalar_lea.hbm %s1, %s173
          %s175 = sshll.u32 %s167, 4
          %s176 = int_to_ptr.vmem [resolvable:$true] %s175
          %181 = dma.hbm_to_vmem [thread:$0]  %s174, 4352, %s176, %s164, 128, 128, 8
        $region24: #{tpu_custom_call.1} parent=15 // pred_fallthru
          _
      $region16: #{tpu_custom_call.1} parent=5 // pred_fallthru
        _
      %p182 = scmp.le.s32.totalorder 1, %s14
      %p183 = scmp.lt.s32.totalorder %s14, 5
      %p184 = pnand %p182, %p183
      %p185 = pneg %p184
      // Predicated region
      $region25: #{tpu_custom_call.1} parent=5 // pred_check
        _
      $region26: #{tpu_custom_call.1} parent=5 // pred_check_branch
        %187 = sbr.rel (%p184) target = $region28
      $region27: #{tpu_custom_call.1} parent=5 // pred_region
        %s188 = ssub.s32 %s14, 1
        %s189 = sand.u32 %s48, 1
        %s190 = scalar_lea.sflag [#allocation3], %s189
        %s191 = sand.u32 %s48, 1
        %s192 = smul.addr %s191, 16
        %s193 = scalar_lea.vmem [#allocation2], %s192
        // Predicated region
        $region29: #{tpu_custom_call.1} parent=27 // pred_check
          %p194 = pneg %p61
        $region30: #{tpu_custom_call.1} parent=27 // pred_check_branch
          %196 = sbr.rel (%p194) target = $region32
        $region31: #{tpu_custom_call.1} parent=27 // pred_region
          %197 = dma.done %s190, 256
        $region32: #{tpu_custom_call.1} parent=27 // pred_fallthru
          _
        %s198 = sand.u32 %s76, 1
        %s199 = scalar_lea.sflag [#allocation5], %s198
        %s200 = sand.u32 %s76, 1
        %s201 = smul.addr %s200, 272
        %s202 = scalar_lea.vmem [#allocation4], %s201
        // Predicated region
        $region33: #{tpu_custom_call.1} parent=27 // pred_check
          %p203 = pneg %p89
        $region34: #{tpu_custom_call.1} parent=27 // pred_check_branch
          %205 = sbr.rel (%p203) target = $region36
        $region35: #{tpu_custom_call.1} parent=27 // pred_region
          %206 = dma.done %s199, 4352
        $region36: #{tpu_custom_call.1} parent=27 // pred_fallthru
          _
        %s207 = sand.u32 %s48, 1
        %s208 = scalar_lea.sflag [#allocation3], %s207
        %s209 = sand.u32 %s48, 1
        %s210 = smul.addr %s209, 16
        %s211 = scalar_lea.vmem [#allocation2], %s210
        %p212 = pneg %p61
        %p213 = pneg %p58
        %s214 = sand.u32 %s76, 1
        %s215 = scalar_lea.sflag [#allocation5], %s214
        %s216 = sand.u32 %s76, 1
        %s217 = smul.addr %s216, 272
        %s218 = scalar_lea.vmem [#allocation4], %s217
        %p219 = pneg %p89
        %p220 = pneg %p86
        %p221 = pneg %p119
        %p222 = pneg %p116
        %s223 = smul.u32 7, %s26
        %p224 = scmp.lt.s32.totalorder %s24, 1
        %s225 = scalar_select %p224, %s24, 1
        %p226 = scmp.lt.s32.totalorder %s223, 13
        %s227 = scalar_select %p226, %s223, 13
        %p228 = scmp.lt.s32.totalorder %s25, 0
        %s229 = scalar_select %p228, %s25, 0
        %s230 = smul.addr %s227, 2
        %s231 = sadd.s32 %s229, %s230
        %s232 = smul.addr %s225, 28
        %s233 = sadd.s32 %s231, %s232
        %s234 = smul.addr %s233, 8
        %s235 = scalar_lea.vmem %s2, %s234
        %s236 = smul.u32 7, %s26
        %p237 = scmp.lt.s32.totalorder %s24, 1
        %s238 = scalar_select %p237, %s24, 1
        %p239 = scmp.lt.s32.totalorder %s236, 13
        %s240 = scalar_select %p239, %s236, 13
        %p241 = scmp.lt.s32.totalorder %s25, 0
        %s242 = scalar_select %p241, %s25, 0
        %s243 = smul.addr %s240, 2
        %s244 = sadd.s32 %s242, %s243
        %s245 = smul.addr %s238, 28
        %s246 = sadd.s32 %s244, %s245
        %s247 = smul.addr %s246, 8
        %s248 = scalar_lea.vmem %s2, %s247
        %s249 = smul.u32 7, %s26
        %s250 = smul.u32 %s26, 7
        %v251 = vld [vmem:[%s193] sm:$0xf]
        %v252 = vld [vmem:[%s193 + $0x4] sm:$0xf]
        %v253 = vld [vmem:[%s193 + $0x8] sm:$0xf]
        %v254 = vld [vmem:[%s193 + $0xc] sm:$0xf]
        %s255 = smul.u32 %s250, 16
        %s256 = scalar_lea.vmem %s202, %s255 [#allocation4]
        %v257 = vld [vmem:[%s256] sm:$0xff]
        %v258 = vld [vmem:[%s256 + $0x8] sm:$0xff]
        %v259 = vld [vmem:[%s256 + $0x10] sm:$0xff]
        %v260 = vld [vmem:[%s256 + $0x18] sm:$0xff]
        %v261 = vld [vmem:[%s256 + $0x20] sm:$0xff]
        %v262 = vld [vmem:[%s256 + $0x28] sm:$0xff]
        %v263 = vld [vmem:[%s256 + $0x30] sm:$0xff]
        %v264 = vld [vmem:[%s256 + $0x38] sm:$0xff]
        %v265 = vld [vmem:[%s256 + $0x40] sm:$0xff]
        %v266 = vld [vmem:[%s256 + $0x48] sm:$0xff]
        %v267 = vld [vmem:[%s256 + $0x50] sm:$0xff]
        %v268 = vld [vmem:[%s256 + $0x58] sm:$0xff]
        %v269 = vld [vmem:[%s256 + $0x60] sm:$0xff]
        %v270 = vld [vmem:[%s256 + $0x68] sm:$0xff]
        %v271 = vld [vmem:[%s256 + $0x70] sm:$0xff]
        %v272 = vld [vmem:[%s256 + $0x78] sm:$0xff]
        %v273 = vld [vmem:[%s256 + $0x80] sm:$0xff]
        %v274 = vld [vmem:[%s256 + $0x88] sm:$0xff]
        %v275 = vld [vmem:[%s256 + $0x90] sm:$0xff]
        %v276 = vld [vmem:[%s256 + $0x98] sm:$0xff]
        %v277 = vlaneseq
        %v278 = vshrl.u32 %v277, 7
        %v279 = vsub.s32 0, %v278
        %v280 = vrot.slane %v251, %v279
        %v281 = vmul.f32 %v257, %v280
        %v282 = vmul.f32 %v258, %v280
        %v283 = vmul.f32 %v259, %v280
        %v284 = vmul.f32 %v260, %v280
        %v285 = vmul.f32 %v261, %v280
        %v286 = vmul.f32 %v262, %v280
        %v287 = vmul.f32 %v263, %v280
        %v288 = vmul.f32 %v264, %v280
        %v289 = vmul.f32 %v265, %v280
        %v290 = vmul.f32 %v266, %v280
        %v291 = vmul.f32 %v267, %v280
        %v292 = vmul.f32 %v268, %v280
        %v293 = vmul.f32 %v269, %v280
        %v294 = vmul.f32 %v270, %v280
        %v295 = vadd.f32 %v281, 0.0
        %v296 = vadd.f32 %v282, 0.0
        %v297 = vadd.f32 %v283, 0.0
        %v298 = vadd.f32 %v284, 0.0
        %v299 = vadd.f32 %v285, 0.0
        %v300 = vadd.f32 %v286, 0.0
        %v301 = vadd.f32 %v287, 0.0
        %v302 = vadd.f32 %v288, 0.0
        %v303 = vadd.f32 %v289, 0.0
        %v304 = vadd.f32 %v290, 0.0
        %v305 = vadd.f32 %v291, 0.0
        %v306 = vadd.f32 %v292, 0.0
        %v307 = vadd.f32 %v293, 0.0
        %v308 = vadd.f32 %v294, 0.0
        %v309 = vlaneseq
        %v310 = vshrl.u32 %v309, 7
        %v311 = vsub.s32 0, %v310
        %v312 = vrot.slane %v252, %v311
        %v313 = vmul.f32 %v259, %v312
        %v314 = vmul.f32 %v260, %v312
        %v315 = vmul.f32 %v261, %v312
        %v316 = vmul.f32 %v262, %v312
        %v317 = vmul.f32 %v263, %v312
        %v318 = vmul.f32 %v264, %v312
        %v319 = vmul.f32 %v265, %v312
        %v320 = vmul.f32 %v266, %v312
        %v321 = vmul.f32 %v267, %v312
        %v322 = vmul.f32 %v268, %v312
        %v323 = vmul.f32 %v269, %v312
        %v324 = vmul.f32 %v270, %v312
        %v325 = vmul.f32 %v271, %v312
        %v326 = vmul.f32 %v272, %v312
        %v327 = vadd.f32 %v295, %v313
        %v328 = vadd.f32 %v296, %v314
        %v329 = vadd.f32 %v297, %v315
        %v330 = vadd.f32 %v298, %v316
        %v331 = vadd.f32 %v299, %v317
        %v332 = vadd.f32 %v300, %v318
        %v333 = vadd.f32 %v301, %v319
        %v334 = vadd.f32 %v302, %v320
        %v335 = vadd.f32 %v303, %v321
        %v336 = vadd.f32 %v304, %v322
        %v337 = vadd.f32 %v305, %v323
        %v338 = vadd.f32 %v306, %v324
        %v339 = vadd.f32 %v307, %v325
        %v340 = vadd.f32 %v308, %v326
        %v341 = vlaneseq
        %v342 = vshrl.u32 %v341, 7
        %v343 = vsub.s32 0, %v342
        %v344 = vrot.slane %v253, %v343
        %v345 = vmul.f32 %v261, %v344
        %v346 = vmul.f32 %v262, %v344
        %v347 = vmul.f32 %v263, %v344
        %v348 = vmul.f32 %v264, %v344
        %v349 = vmul.f32 %v265, %v344
        %v350 = vmul.f32 %v266, %v344
        %v351 = vmul.f32 %v267, %v344
        %v352 = vmul.f32 %v268, %v344
        %v353 = vmul.f32 %v269, %v344
        %v354 = vmul.f32 %v270, %v344
        %v355 = vmul.f32 %v271, %v344
        %v356 = vmul.f32 %v272, %v344
        %v357 = vmul.f32 %v273, %v344
        %v358 = vmul.f32 %v274, %v344
        %v359 = vadd.f32 %v327, %v345
        %v360 = vadd.f32 %v328, %v346
        %v361 = vadd.f32 %v329, %v347
        %v362 = vadd.f32 %v330, %v348
        %v363 = vadd.f32 %v331, %v349
        %v364 = vadd.f32 %v332, %v350
        %v365 = vadd.f32 %v333, %v351
        %v366 = vadd.f32 %v334, %v352
        %v367 = vadd.f32 %v335, %v353
        %v368 = vadd.f32 %v336, %v354
        %v369 = vadd.f32 %v337, %v355
        %v370 = vadd.f32 %v338, %v356
        %v371 = vadd.f32 %v339, %v357
        %v372 = vadd.f32 %v340, %v358
        %v373 = vlaneseq
        %v374 = vshrl.u32 %v373, 7
        %v375 = vsub.s32 0, %v374
        %v376 = vrot.slane %v254, %v375
        %v377 = vmul.f32 %v263, %v376
        %v378 = vmul.f32 %v264, %v376
        %v379 = vmul.f32 %v265, %v376
        %v380 = vmul.f32 %v266, %v376
        %v381 = vmul.f32 %v267, %v376
        %v382 = vmul.f32 %v268, %v376
        %v383 = vmul.f32 %v269, %v376
        %v384 = vmul.f32 %v270, %v376
        %v385 = vmul.f32 %v271, %v376
        %v386 = vmul.f32 %v272, %v376
        %v387 = vmul.f32 %v273, %v376
        %v388 = vmul.f32 %v274, %v376
        %v389 = vmul.f32 %v275, %v376
        %v390 = vmul.f32 %v276, %v376
        %v391 = vadd.f32 %v359, %v377
        %v392 = vadd.f32 %v360, %v378
        %v393 = vadd.f32 %v361, %v379
        %v394 = vadd.f32 %v362, %v380
        %v395 = vadd.f32 %v363, %v381
        %v396 = vadd.f32 %v364, %v382
        %v397 = vadd.f32 %v365, %v383
        %v398 = vadd.f32 %v366, %v384
        %v399 = vadd.f32 %v367, %v385
        %v400 = vadd.f32 %v368, %v386
        %v401 = vadd.f32 %v369, %v387
        %v402 = vadd.f32 %v370, %v388
        %v403 = vadd.f32 %v371, %v389
        %v404 = vadd.f32 %v372, %v390
        %v405 = vlaneseq
        %v406 = vshrl.u32 %v405, 7
        %v407 = vsub.s32 1, %v406
        %v408 = vrot.slane %v251, %v407
        %v409 = vmul.f32 %v257, %v408
        %v410 = vmul.f32 %v258, %v408
        %v411 = vmul.f32 %v259, %v408
        %v412 = vmul.f32 %v260, %v408
        %v413 = vmul.f32 %v261, %v408
        %v414 = vmul.f32 %v262, %v408
        %v415 = vmul.f32 %v263, %v408
        %v416 = vmul.f32 %v264, %v408
        %v417 = vmul.f32 %v265, %v408
        %v418 = vmul.f32 %v266, %v408
        %v419 = vmul.f32 %v267, %v408
        %v420 = vmul.f32 %v268, %v408
        %v421 = vmul.f32 %v269, %v408
        %v422 = vmul.f32 %v270, %v408
        %vm437 = vcmask 1046528
        %v438 = vrot.slane %v409, 1
        %v439 = vrot.slane %v410, 1
        %v440 = vsel %vm437, %v438, %v439
        %v441 = vrot.slane %v411, 1
        %v442 = vrot.slane %v412, 1
        %v443 = vsel %vm437, %v441, %v442
        %v444 = vrot.slane %v413, 1
        %v445 = vrot.slane %v414, 1
        %v446 = vsel %vm437, %v444, %v445
        %v447 = vrot.slane %v415, 1
        %v448 = vrot.slane %v416, 1
        %v449 = vsel %vm437, %v447, %v448
        %v450 = vrot.slane %v417, 1
        %v451 = vrot.slane %v418, 1
        %v452 = vsel %vm437, %v450, %v451
        %v453 = vrot.slane %v419, 1
        %v454 = vrot.slane %v420, 1
        %v455 = vsel %vm437, %v453, %v454
        %v456 = vrot.slane %v421, 1
        %v457 = vrot.slane %v422, 1
        %v458 = vsel %vm437, %v456, %v457
        %v473 = vadd.f32 %v391, %v440
        %v474 = vadd.f32 %v392, %v439
        %v475 = vadd.f32 %v393, %v443
        %v476 = vadd.f32 %v394, %v442
        %v477 = vadd.f32 %v395, %v446
        %v478 = vadd.f32 %v396, %v445
        %v479 = vadd.f32 %v397, %v449
        %v480 = vadd.f32 %v398, %v448
        %v481 = vadd.f32 %v399, %v452
        %v482 = vadd.f32 %v400, %v451
        %v483 = vadd.f32 %v401, %v455
        %v484 = vadd.f32 %v402, %v454
        %v485 = vadd.f32 %v403, %v458
        %v486 = vadd.f32 %v404, %v457
        %v487 = vlaneseq
        %v488 = vshrl.u32 %v487, 7
        %v489 = vsub.s32 1, %v488
        %v490 = vrot.slane %v252, %v489
        %v491 = vmul.f32 %v259, %v490
        %v492 = vmul.f32 %v260, %v490
        %v493 = vmul.f32 %v261, %v490
        %v494 = vmul.f32 %v262, %v490
        %v495 = vmul.f32 %v263, %v490
        %v496 = vmul.f32 %v264, %v490
        %v497 = vmul.f32 %v265, %v490
        %v498 = vmul.f32 %v266, %v490
        %v499 = vmul.f32 %v267, %v490
        %v500 = vmul.f32 %v268, %v490
        %v501 = vmul.f32 %v269, %v490
        %v502 = vmul.f32 %v270, %v490
        %v503 = vmul.f32 %v271, %v490
        %v504 = vmul.f32 %v272, %v490
        %v519 = vrot.slane %v491, 1
        %v520 = vrot.slane %v492, 1
        %v521 = vsel %vm437, %v519, %v520
        %v522 = vrot.slane %v493, 1
        %v523 = vrot.slane %v494, 1
        %v524 = vsel %vm437, %v522, %v523
        %v525 = vrot.slane %v495, 1
        %v526 = vrot.slane %v496, 1
        %v527 = vsel %vm437, %v525, %v526
        %v528 = vrot.slane %v497, 1
        %v529 = vrot.slane %v498, 1
        %v530 = vsel %vm437, %v528, %v529
        %v531 = vrot.slane %v499, 1
        %v532 = vrot.slane %v500, 1
        %v533 = vsel %vm437, %v531, %v532
        %v534 = vrot.slane %v501, 1
        %v535 = vrot.slane %v502, 1
        %v536 = vsel %vm437, %v534, %v535
        %v537 = vrot.slane %v503, 1
        %v538 = vrot.slane %v504, 1
        %v539 = vsel %vm437, %v537, %v538
        %v554 = vadd.f32 %v473, %v521
        %v555 = vadd.f32 %v474, %v520
        %v556 = vadd.f32 %v475, %v524
        %v557 = vadd.f32 %v476, %v523
        %v558 = vadd.f32 %v477, %v527
        %v559 = vadd.f32 %v478, %v526
        %v560 = vadd.f32 %v479, %v530
        %v561 = vadd.f32 %v480, %v529
        %v562 = vadd.f32 %v481, %v533
        %v563 = vadd.f32 %v482, %v532
        %v564 = vadd.f32 %v483, %v536
        %v565 = vadd.f32 %v484, %v535
        %v566 = vadd.f32 %v485, %v539
        %v567 = vadd.f32 %v486, %v538
        %v568 = vlaneseq
        %v569 = vshrl.u32 %v568, 7
        %v570 = vsub.s32 1, %v569
        %v571 = vrot.slane %v253, %v570
        %v572 = vmul.f32 %v261, %v571
        %v573 = vmul.f32 %v262, %v571
        %v574 = vmul.f32 %v263, %v571
        %v575 = vmul.f32 %v264, %v571
        %v576 = vmul.f32 %v265, %v571
        %v577 = vmul.f32 %v266, %v571
        %v578 = vmul.f32 %v267, %v571
        %v579 = vmul.f32 %v268, %v571
        %v580 = vmul.f32 %v269, %v571
        %v581 = vmul.f32 %v270, %v571
        %v582 = vmul.f32 %v271, %v571
        %v583 = vmul.f32 %v272, %v571
        %v584 = vmul.f32 %v273, %v571
        %v585 = vmul.f32 %v274, %v571
        %v600 = vrot.slane %v572, 1
        %v601 = vrot.slane %v573, 1
        %v602 = vsel %vm437, %v600, %v601
        %v603 = vrot.slane %v574, 1
        %v604 = vrot.slane %v575, 1
        %v605 = vsel %vm437, %v603, %v604
        %v606 = vrot.slane %v576, 1
        %v607 = vrot.slane %v577, 1
        %v608 = vsel %vm437, %v606, %v607
        %v609 = vrot.slane %v578, 1
        %v610 = vrot.slane %v579, 1
        %v611 = vsel %vm437, %v609, %v610
        %v612 = vrot.slane %v580, 1
        %v613 = vrot.slane %v581, 1
        %v614 = vsel %vm437, %v612, %v613
        %v615 = vrot.slane %v582, 1
        %v616 = vrot.slane %v583, 1
        %v617 = vsel %vm437, %v615, %v616
        %v618 = vrot.slane %v584, 1
        %v619 = vrot.slane %v585, 1
        %v620 = vsel %vm437, %v618, %v619
        %v635 = vadd.f32 %v554, %v602
        %v636 = vadd.f32 %v555, %v601
        %v637 = vadd.f32 %v556, %v605
        %v638 = vadd.f32 %v557, %v604
        %v639 = vadd.f32 %v558, %v608
        %v640 = vadd.f32 %v559, %v607
        %v641 = vadd.f32 %v560, %v611
        %v642 = vadd.f32 %v561, %v610
        %v643 = vadd.f32 %v562, %v614
        %v644 = vadd.f32 %v563, %v613
        %v645 = vadd.f32 %v564, %v617
        %v646 = vadd.f32 %v565, %v616
        %v647 = vadd.f32 %v566, %v620
        %v648 = vadd.f32 %v567, %v619
        %v649 = vlaneseq
        %v650 = vshrl.u32 %v649, 7
        %v651 = vsub.s32 1, %v650
        %v652 = vrot.slane %v254, %v651
        %v653 = vmul.f32 %v263, %v652
        %v654 = vmul.f32 %v264, %v652
        %v655 = vmul.f32 %v265, %v652
        %v656 = vmul.f32 %v266, %v652
        %v657 = vmul.f32 %v267, %v652
        %v658 = vmul.f32 %v268, %v652
        %v659 = vmul.f32 %v269, %v652
        %v660 = vmul.f32 %v270, %v652
        %v661 = vmul.f32 %v271, %v652
        %v662 = vmul.f32 %v272, %v652
        %v663 = vmul.f32 %v273, %v652
        %v664 = vmul.f32 %v274, %v652
        %v665 = vmul.f32 %v275, %v652
        %v666 = vmul.f32 %v276, %v652
        %v681 = vrot.slane %v653, 1
        %v682 = vrot.slane %v654, 1
        %v683 = vsel %vm437, %v681, %v682
        %v684 = vrot.slane %v655, 1
        %v685 = vrot.slane %v656, 1
        %v686 = vsel %vm437, %v684, %v685
        %v687 = vrot.slane %v657, 1
        %v688 = vrot.slane %v658, 1
        %v689 = vsel %vm437, %v687, %v688
        %v690 = vrot.slane %v659, 1
        %v691 = vrot.slane %v660, 1
        %v692 = vsel %vm437, %v690, %v691
        %v693 = vrot.slane %v661, 1
        %v694 = vrot.slane %v662, 1
        %v695 = vsel %vm437, %v693, %v694
        %v696 = vrot.slane %v663, 1
        %v697 = vrot.slane %v664, 1
        %v698 = vsel %vm437, %v696, %v697
        %v699 = vrot.slane %v665, 1
        %v700 = vrot.slane %v666, 1
        %v701 = vsel %vm437, %v699, %v700
        %v716 = vadd.f32 %v635, %v683
        %v717 = vadd.f32 %v636, %v682
        %v718 = vadd.f32 %v637, %v686
        %v719 = vadd.f32 %v638, %v685
        %v720 = vadd.f32 %v639, %v689
        %v721 = vadd.f32 %v640, %v688
        %v722 = vadd.f32 %v641, %v692
        %v723 = vadd.f32 %v642, %v691
        %v724 = vadd.f32 %v643, %v695
        %v725 = vadd.f32 %v644, %v694
        %v726 = vadd.f32 %v645, %v698
        %v727 = vadd.f32 %v646, %v697
        %v728 = vadd.f32 %v647, %v701
        %v729 = vadd.f32 %v648, %v700
        %v730 = vlaneseq
        %v731 = vshrl.u32 %v730, 7
        %v732 = vsub.s32 2, %v731
        %v733 = vrot.slane %v251, %v732
        %v734 = vmul.f32 %v257, %v733
        %v735 = vmul.f32 %v258, %v733
        %v736 = vmul.f32 %v259, %v733
        %v737 = vmul.f32 %v260, %v733
        %v738 = vmul.f32 %v261, %v733
        %v739 = vmul.f32 %v262, %v733
        %v740 = vmul.f32 %v263, %v733
        %v741 = vmul.f32 %v264, %v733
        %v742 = vmul.f32 %v265, %v733
        %v743 = vmul.f32 %v266, %v733
        %v744 = vmul.f32 %v267, %v733
        %v745 = vmul.f32 %v268, %v733
        %v746 = vmul.f32 %v269, %v733
        %v747 = vmul.f32 %v270, %v733
        %vm762 = vcmask 1045504
        %v763 = vrot.slane %v734, 2
        %v764 = vrot.slane %v735, 2
        %v765 = vsel %vm762, %v763, %v764
        %v766 = vrot.slane %v736, 2
        %v767 = vrot.slane %v737, 2
        %v768 = vsel %vm762, %v766, %v767
        %v769 = vrot.slane %v738, 2
        %v770 = vrot.slane %v739, 2
        %v771 = vsel %vm762, %v769, %v770
        %v772 = vrot.slane %v740, 2
        %v773 = vrot.slane %v741, 2
        %v774 = vsel %vm762, %v772, %v773
        %v775 = vrot.slane %v742, 2
        %v776 = vrot.slane %v743, 2
        %v777 = vsel %vm762, %v775, %v776
        %v778 = vrot.slane %v744, 2
        %v779 = vrot.slane %v745, 2
        %v780 = vsel %vm762, %v778, %v779
        %v781 = vrot.slane %v746, 2
        %v782 = vrot.slane %v747, 2
        %v783 = vsel %vm762, %v781, %v782
        %v798 = vadd.f32 %v716, %v765
        %v799 = vadd.f32 %v717, %v764
        %v800 = vadd.f32 %v718, %v768
        %v801 = vadd.f32 %v719, %v767
        %v802 = vadd.f32 %v720, %v771
        %v803 = vadd.f32 %v721, %v770
        %v804 = vadd.f32 %v722, %v774
        %v805 = vadd.f32 %v723, %v773
        %v806 = vadd.f32 %v724, %v777
        %v807 = vadd.f32 %v725, %v776
        %v808 = vadd.f32 %v726, %v780
        %v809 = vadd.f32 %v727, %v779
        %v810 = vadd.f32 %v728, %v783
        %v811 = vadd.f32 %v729, %v782
        %v812 = vlaneseq
        %v813 = vshrl.u32 %v812, 7
        %v814 = vsub.s32 2, %v813
        %v815 = vrot.slane %v252, %v814
        %v816 = vmul.f32 %v259, %v815
        %v817 = vmul.f32 %v260, %v815
        %v818 = vmul.f32 %v261, %v815
        %v819 = vmul.f32 %v262, %v815
        %v820 = vmul.f32 %v263, %v815
        %v821 = vmul.f32 %v264, %v815
        %v822 = vmul.f32 %v265, %v815
        %v823 = vmul.f32 %v266, %v815
        %v824 = vmul.f32 %v267, %v815
        %v825 = vmul.f32 %v268, %v815
        %v826 = vmul.f32 %v269, %v815
        %v827 = vmul.f32 %v270, %v815
        %v828 = vmul.f32 %v271, %v815
        %v829 = vmul.f32 %v272, %v815
        %v844 = vrot.slane %v816, 2
        %v845 = vrot.slane %v817, 2
        %v846 = vsel %vm762, %v844, %v845
        %v847 = vrot.slane %v818, 2
        %v848 = vrot.slane %v819, 2
        %v849 = vsel %vm762, %v847, %v848
        %v850 = vrot.slane %v820, 2
        %v851 = vrot.slane %v821, 2
        %v852 = vsel %vm762, %v850, %v851
        %v853 = vrot.slane %v822, 2
        %v854 = vrot.slane %v823, 2
        %v855 = vsel %vm762, %v853, %v854
        %v856 = vrot.slane %v824, 2
        %v857 = vrot.slane %v825, 2
        %v858 = vsel %vm762, %v856, %v857
        %v859 = vrot.slane %v826, 2
        %v860 = vrot.slane %v827, 2
        %v861 = vsel %vm762, %v859, %v860
        %v862 = vrot.slane %v828, 2
        %v863 = vrot.slane %v829, 2
        %v864 = vsel %vm762, %v862, %v863
        %v879 = vadd.f32 %v798, %v846
        %v880 = vadd.f32 %v799, %v845
        %v881 = vadd.f32 %v800, %v849
        %v882 = vadd.f32 %v801, %v848
        %v883 = vadd.f32 %v802, %v852
        %v884 = vadd.f32 %v803, %v851
        %v885 = vadd.f32 %v804, %v855
        %v886 = vadd.f32 %v805, %v854
        %v887 = vadd.f32 %v806, %v858
        %v888 = vadd.f32 %v807, %v857
        %v889 = vadd.f32 %v808, %v861
        %v890 = vadd.f32 %v809, %v860
        %v891 = vadd.f32 %v810, %v864
        %v892 = vadd.f32 %v811, %v863
        %v893 = vlaneseq
        %v894 = vshrl.u32 %v893, 7
        %v895 = vsub.s32 2, %v894
        %v896 = vrot.slane %v253, %v895
        %v897 = vmul.f32 %v261, %v896
        %v898 = vmul.f32 %v262, %v896
        %v899 = vmul.f32 %v263, %v896
        %v900 = vmul.f32 %v264, %v896
        %v901 = vmul.f32 %v265, %v896
        %v902 = vmul.f32 %v266, %v896
        %v903 = vmul.f32 %v267, %v896
        %v904 = vmul.f32 %v268, %v896
        %v905 = vmul.f32 %v269, %v896
        %v906 = vmul.f32 %v270, %v896
        %v907 = vmul.f32 %v271, %v896
        %v908 = vmul.f32 %v272, %v896
        %v909 = vmul.f32 %v273, %v896
        %v910 = vmul.f32 %v274, %v896
        %v925 = vrot.slane %v897, 2
        %v926 = vrot.slane %v898, 2
        %v927 = vsel %vm762, %v925, %v926
        %v928 = vrot.slane %v899, 2
        %v929 = vrot.slane %v900, 2
        %v930 = vsel %vm762, %v928, %v929
        %v931 = vrot.slane %v901, 2
        %v932 = vrot.slane %v902, 2
        %v933 = vsel %vm762, %v931, %v932
        %v934 = vrot.slane %v903, 2
        %v935 = vrot.slane %v904, 2
        %v936 = vsel %vm762, %v934, %v935
        %v937 = vrot.slane %v905, 2
        %v938 = vrot.slane %v906, 2
        %v939 = vsel %vm762, %v937, %v938
        %v940 = vrot.slane %v907, 2
        %v941 = vrot.slane %v908, 2
        %v942 = vsel %vm762, %v940, %v941
        %v943 = vrot.slane %v909, 2
        %v944 = vrot.slane %v910, 2
        %v945 = vsel %vm762, %v943, %v944
        %v960 = vadd.f32 %v879, %v927
        %v961 = vadd.f32 %v880, %v926
        %v962 = vadd.f32 %v881, %v930
        %v963 = vadd.f32 %v882, %v929
        %v964 = vadd.f32 %v883, %v933
        %v965 = vadd.f32 %v884, %v932
        %v966 = vadd.f32 %v885, %v936
        %v967 = vadd.f32 %v886, %v935
        %v968 = vadd.f32 %v887, %v939
        %v969 = vadd.f32 %v888, %v938
        %v970 = vadd.f32 %v889, %v942
        %v971 = vadd.f32 %v890, %v941
        %v972 = vadd.f32 %v891, %v945
        %v973 = vadd.f32 %v892, %v944
        %v974 = vlaneseq
        %v975 = vshrl.u32 %v974, 7
        %v976 = vsub.s32 2, %v975
        %v977 = vrot.slane %v254, %v976
        %v978 = vmul.f32 %v263, %v977
        %v979 = vmul.f32 %v264, %v977
        %v980 = vmul.f32 %v265, %v977
        %v981 = vmul.f32 %v266, %v977
        %v982 = vmul.f32 %v267, %v977
        %v983 = vmul.f32 %v268, %v977
        %v984 = vmul.f32 %v269, %v977
        %v985 = vmul.f32 %v270, %v977
        %v986 = vmul.f32 %v271, %v977
        %v987 = vmul.f32 %v272, %v977
        %v988 = vmul.f32 %v273, %v977
        %v989 = vmul.f32 %v274, %v977
        %v990 = vmul.f32 %v275, %v977
        %v991 = vmul.f32 %v276, %v977
        %v1006 = vrot.slane %v978, 2
        %v1007 = vrot.slane %v979, 2
        %v1008 = vsel %vm762, %v1006, %v1007
        %v1009 = vrot.slane %v980, 2
        %v1010 = vrot.slane %v981, 2
        %v1011 = vsel %vm762, %v1009, %v1010
        %v1012 = vrot.slane %v982, 2
        %v1013 = vrot.slane %v983, 2
        %v1014 = vsel %vm762, %v1012, %v1013
        %v1015 = vrot.slane %v984, 2
        %v1016 = vrot.slane %v985, 2
        %v1017 = vsel %vm762, %v1015, %v1016
        %v1018 = vrot.slane %v986, 2
        %v1019 = vrot.slane %v987, 2
        %v1020 = vsel %vm762, %v1018, %v1019
        %v1021 = vrot.slane %v988, 2
        %v1022 = vrot.slane %v989, 2
        %v1023 = vsel %vm762, %v1021, %v1022
        %v1024 = vrot.slane %v990, 2
        %v1025 = vrot.slane %v991, 2
        %v1026 = vsel %vm762, %v1024, %v1025
        %v1041 = vadd.f32 %v960, %v1008
        %v1042 = vadd.f32 %v961, %v1007
        %v1043 = vadd.f32 %v962, %v1011
        %v1044 = vadd.f32 %v963, %v1010
        %v1045 = vadd.f32 %v964, %v1014
        %v1046 = vadd.f32 %v965, %v1013
        %v1047 = vadd.f32 %v966, %v1017
        %v1048 = vadd.f32 %v967, %v1016
        %v1049 = vadd.f32 %v968, %v1020
        %v1050 = vadd.f32 %v969, %v1019
        %v1051 = vadd.f32 %v970, %v1023
        %v1052 = vadd.f32 %v971, %v1022
        %v1053 = vadd.f32 %v972, %v1026
        %v1054 = vadd.f32 %v973, %v1025
        %v1055 = vlaneseq
        %v1056 = vshrl.u32 %v1055, 7
        %v1057 = vsub.s32 3, %v1056
        %v1058 = vrot.slane %v251, %v1057
        %v1059 = vmul.f32 %v257, %v1058
        %v1060 = vmul.f32 %v258, %v1058
        %v1061 = vmul.f32 %v259, %v1058
        %v1062 = vmul.f32 %v260, %v1058
        %v1063 = vmul.f32 %v261, %v1058
        %v1064 = vmul.f32 %v262, %v1058
        %v1065 = vmul.f32 %v263, %v1058
        %v1066 = vmul.f32 %v264, %v1058
        %v1067 = vmul.f32 %v265, %v1058
        %v1068 = vmul.f32 %v266, %v1058
        %v1069 = vmul.f32 %v267, %v1058
        %v1070 = vmul.f32 %v268, %v1058
        %v1071 = vmul.f32 %v269, %v1058
        %v1072 = vmul.f32 %v270, %v1058
        %vm1087 = vcmask 1044480
        %v1088 = vrot.slane %v1059, 3
        %v1089 = vrot.slane %v1060, 3
        %v1090 = vsel %vm1087, %v1088, %v1089
        %v1091 = vrot.slane %v1061, 3
        %v1092 = vrot.slane %v1062, 3
        %v1093 = vsel %vm1087, %v1091, %v1092
        %v1094 = vrot.slane %v1063, 3
        %v1095 = vrot.slane %v1064, 3
        %v1096 = vsel %vm1087, %v1094, %v1095
        %v1097 = vrot.slane %v1065, 3
        %v1098 = vrot.slane %v1066, 3
        %v1099 = vsel %vm1087, %v1097, %v1098
        %v1100 = vrot.slane %v1067, 3
        %v1101 = vrot.slane %v1068, 3
        %v1102 = vsel %vm1087, %v1100, %v1101
        %v1103 = vrot.slane %v1069, 3
        %v1104 = vrot.slane %v1070, 3
        %v1105 = vsel %vm1087, %v1103, %v1104
        %v1106 = vrot.slane %v1071, 3
        %v1107 = vrot.slane %v1072, 3
        %v1108 = vsel %vm1087, %v1106, %v1107
        %v1123 = vadd.f32 %v1041, %v1090
        %v1124 = vadd.f32 %v1042, %v1089
        %v1125 = vadd.f32 %v1043, %v1093
        %v1126 = vadd.f32 %v1044, %v1092
        %v1127 = vadd.f32 %v1045, %v1096
        %v1128 = vadd.f32 %v1046, %v1095
        %v1129 = vadd.f32 %v1047, %v1099
        %v1130 = vadd.f32 %v1048, %v1098
        %v1131 = vadd.f32 %v1049, %v1102
        %v1132 = vadd.f32 %v1050, %v1101
        %v1133 = vadd.f32 %v1051, %v1105
        %v1134 = vadd.f32 %v1052, %v1104
        %v1135 = vadd.f32 %v1053, %v1108
        %v1136 = vadd.f32 %v1054, %v1107
        %v1137 = vlaneseq
        %v1138 = vshrl.u32 %v1137, 7
        %v1139 = vsub.s32 3, %v1138
        %v1140 = vrot.slane %v252, %v1139
        %v1141 = vmul.f32 %v259, %v1140
        %v1142 = vmul.f32 %v260, %v1140
        %v1143 = vmul.f32 %v261, %v1140
        %v1144 = vmul.f32 %v262, %v1140
        %v1145 = vmul.f32 %v263, %v1140
        %v1146 = vmul.f32 %v264, %v1140
        %v1147 = vmul.f32 %v265, %v1140
        %v1148 = vmul.f32 %v266, %v1140
        %v1149 = vmul.f32 %v267, %v1140
        %v1150 = vmul.f32 %v268, %v1140
        %v1151 = vmul.f32 %v269, %v1140
        %v1152 = vmul.f32 %v270, %v1140
        %v1153 = vmul.f32 %v271, %v1140
        %v1154 = vmul.f32 %v272, %v1140
        %v1169 = vrot.slane %v1141, 3
        %v1170 = vrot.slane %v1142, 3
        %v1171 = vsel %vm1087, %v1169, %v1170
        %v1172 = vrot.slane %v1143, 3
        %v1173 = vrot.slane %v1144, 3
        %v1174 = vsel %vm1087, %v1172, %v1173
        %v1175 = vrot.slane %v1145, 3
        %v1176 = vrot.slane %v1146, 3
        %v1177 = vsel %vm1087, %v1175, %v1176
        %v1178 = vrot.slane %v1147, 3
        %v1179 = vrot.slane %v1148, 3
        %v1180 = vsel %vm1087, %v1178, %v1179
        %v1181 = vrot.slane %v1149, 3
        %v1182 = vrot.slane %v1150, 3
        %v1183 = vsel %vm1087, %v1181, %v1182
        %v1184 = vrot.slane %v1151, 3
        %v1185 = vrot.slane %v1152, 3
        %v1186 = vsel %vm1087, %v1184, %v1185
        %v1187 = vrot.slane %v1153, 3
        %v1188 = vrot.slane %v1154, 3
        %v1189 = vsel %vm1087, %v1187, %v1188
        %v1204 = vadd.f32 %v1123, %v1171
        %v1205 = vadd.f32 %v1124, %v1170
        %v1206 = vadd.f32 %v1125, %v1174
        %v1207 = vadd.f32 %v1126, %v1173
        %v1208 = vadd.f32 %v1127, %v1177
        %v1209 = vadd.f32 %v1128, %v1176
        %v1210 = vadd.f32 %v1129, %v1180
        %v1211 = vadd.f32 %v1130, %v1179
        %v1212 = vadd.f32 %v1131, %v1183
        %v1213 = vadd.f32 %v1132, %v1182
        %v1214 = vadd.f32 %v1133, %v1186
        %v1215 = vadd.f32 %v1134, %v1185
        %v1216 = vadd.f32 %v1135, %v1189
        %v1217 = vadd.f32 %v1136, %v1188
        %v1218 = vlaneseq
        %v1219 = vshrl.u32 %v1218, 7
        %v1220 = vsub.s32 3, %v1219
        %v1221 = vrot.slane %v253, %v1220
        %v1222 = vmul.f32 %v261, %v1221
        %v1223 = vmul.f32 %v262, %v1221
        %v1224 = vmul.f32 %v263, %v1221
        %v1225 = vmul.f32 %v264, %v1221
        %v1226 = vmul.f32 %v265, %v1221
        %v1227 = vmul.f32 %v266, %v1221
        %v1228 = vmul.f32 %v267, %v1221
        %v1229 = vmul.f32 %v268, %v1221
        %v1230 = vmul.f32 %v269, %v1221
        %v1231 = vmul.f32 %v270, %v1221
        %v1232 = vmul.f32 %v271, %v1221
        %v1233 = vmul.f32 %v272, %v1221
        %v1234 = vmul.f32 %v273, %v1221
        %v1235 = vmul.f32 %v274, %v1221
        %v1250 = vrot.slane %v1222, 3
        %v1251 = vrot.slane %v1223, 3
        %v1252 = vsel %vm1087, %v1250, %v1251
        %v1253 = vrot.slane %v1224, 3
        %v1254 = vrot.slane %v1225, 3
        %v1255 = vsel %vm1087, %v1253, %v1254
        %v1256 = vrot.slane %v1226, 3
        %v1257 = vrot.slane %v1227, 3
        %v1258 = vsel %vm1087, %v1256, %v1257
        %v1259 = vrot.slane %v1228, 3
        %v1260 = vrot.slane %v1229, 3
        %v1261 = vsel %vm1087, %v1259, %v1260
        %v1262 = vrot.slane %v1230, 3
        %v1263 = vrot.slane %v1231, 3
        %v1264 = vsel %vm1087, %v1262, %v1263
        %v1265 = vrot.slane %v1232, 3
        %v1266 = vrot.slane %v1233, 3
        %v1267 = vsel %vm1087, %v1265, %v1266
        %v1268 = vrot.slane %v1234, 3
        %v1269 = vrot.slane %v1235, 3
        %v1270 = vsel %vm1087, %v1268, %v1269
        %v1285 = vadd.f32 %v1204, %v1252
        %v1286 = vadd.f32 %v1205, %v1251
        %v1287 = vadd.f32 %v1206, %v1255
        %v1288 = vadd.f32 %v1207, %v1254
        %v1289 = vadd.f32 %v1208, %v1258
        %v1290 = vadd.f32 %v1209, %v1257
        %v1291 = vadd.f32 %v1210, %v1261
        %v1292 = vadd.f32 %v1211, %v1260
        %v1293 = vadd.f32 %v1212, %v1264
        %v1294 = vadd.f32 %v1213, %v1263
        %v1295 = vadd.f32 %v1214, %v1267
        %v1296 = vadd.f32 %v1215, %v1266
        %v1297 = vadd.f32 %v1216, %v1270
        %v1298 = vadd.f32 %v1217, %v1269
        %v1299 = vlaneseq
        %v1300 = vshrl.u32 %v1299, 7
        %v1301 = vsub.s32 3, %v1300
        %v1302 = vrot.slane %v254, %v1301
        %v1303 = vmul.f32 %v263, %v1302
        %v1304 = vmul.f32 %v264, %v1302
        %v1305 = vmul.f32 %v265, %v1302
        %v1306 = vmul.f32 %v266, %v1302
        %v1307 = vmul.f32 %v267, %v1302
        %v1308 = vmul.f32 %v268, %v1302
        %v1309 = vmul.f32 %v269, %v1302
        %v1310 = vmul.f32 %v270, %v1302
        %v1311 = vmul.f32 %v271, %v1302
        %v1312 = vmul.f32 %v272, %v1302
        %v1313 = vmul.f32 %v273, %v1302
        %v1314 = vmul.f32 %v274, %v1302
        %v1315 = vmul.f32 %v275, %v1302
        %v1316 = vmul.f32 %v276, %v1302
        %v1331 = vrot.slane %v1303, 3
        %v1332 = vrot.slane %v1304, 3
        %v1333 = vsel %vm1087, %v1331, %v1332
        %v1334 = vrot.slane %v1305, 3
        %v1335 = vrot.slane %v1306, 3
        %v1336 = vsel %vm1087, %v1334, %v1335
        %v1337 = vrot.slane %v1307, 3
        %v1338 = vrot.slane %v1308, 3
        %v1339 = vsel %vm1087, %v1337, %v1338
        %v1340 = vrot.slane %v1309, 3
        %v1341 = vrot.slane %v1310, 3
        %v1342 = vsel %vm1087, %v1340, %v1341
        %v1343 = vrot.slane %v1311, 3
        %v1344 = vrot.slane %v1312, 3
        %v1345 = vsel %vm1087, %v1343, %v1344
        %v1346 = vrot.slane %v1313, 3
        %v1347 = vrot.slane %v1314, 3
        %v1348 = vsel %vm1087, %v1346, %v1347
        %v1349 = vrot.slane %v1315, 3
        %v1350 = vrot.slane %v1316, 3
        %v1351 = vsel %vm1087, %v1349, %v1350
        %v1366 = vadd.f32 %v1285, %v1333
        %v1367 = vadd.f32 %v1286, %v1332
        %v1368 = vadd.f32 %v1287, %v1336
        %v1369 = vadd.f32 %v1288, %v1335
        %v1370 = vadd.f32 %v1289, %v1339
        %v1371 = vadd.f32 %v1290, %v1338
        %v1372 = vadd.f32 %v1291, %v1342
        %v1373 = vadd.f32 %v1292, %v1341
        %v1374 = vadd.f32 %v1293, %v1345
        %v1375 = vadd.f32 %v1294, %v1344
        %v1376 = vadd.f32 %v1295, %v1348
        %v1377 = vadd.f32 %v1296, %v1347
        %v1378 = vadd.f32 %v1297, %v1351
        %v1379 = vadd.f32 %v1298, %v1350
        %1380 = vst [vmem:[%s248] sm:$0xff] %v1366
        %1381 = vst [vmem:[%s248 + $0x8] sm:$0x1f] %v1367
        %1382 = vst [vmem:[%s248 + $0x10] sm:$0xff] %v1368
        %1383 = vst [vmem:[%s248 + $0x18] sm:$0x1f] %v1369
        %1384 = vst [vmem:[%s248 + $0x20] sm:$0xff] %v1370
        %1385 = vst [vmem:[%s248 + $0x28] sm:$0x1f] %v1371
        %1386 = vst [vmem:[%s248 + $0x30] sm:$0xff] %v1372
        %1387 = vst [vmem:[%s248 + $0x38] sm:$0x1f] %v1373
        %1388 = vst [vmem:[%s248 + $0x40] sm:$0xff] %v1374
        %1389 = vst [vmem:[%s248 + $0x48] sm:$0x1f] %v1375
        %1390 = vst [vmem:[%s248 + $0x50] sm:$0xff] %v1376
        %1391 = vst [vmem:[%s248 + $0x58] sm:$0x1f] %v1377
        %1392 = vst [vmem:[%s248 + $0x60] sm:$0xff] %v1378
        %1393 = vst [vmem:[%s248 + $0x68] sm:$0x1f] %v1379
        %s1394 = smul.u32 7, %s26
        %p1395 = scmp.lt.s32.totalorder %s24, 1
        %s1396 = scalar_select %p1395, %s24, 1
        %p1397 = scmp.lt.s32.totalorder %s1394, 13
        %s1398 = scalar_select %p1397, %s1394, 13
        %p1399 = scmp.lt.s32.totalorder %s25, 0
        %s1400 = scalar_select %p1399, %s25, 0
        %s1401 = smul.addr %s1398, 2
        %s1402 = sadd.s32 %s1400, %s1401
        %s1403 = smul.addr %s1396, 28
        %s1404 = sadd.s32 %s1402, %s1403
        %s1405 = smul.addr %s1404, 8
        %s1406 = scalar_lea.vmem %s2, %s1405
        // Predicated region
        $region37: #{tpu_custom_call.1} parent=27 // pred_check
          %p1407 = pneg %p116
        $region38: #{tpu_custom_call.1} parent=27 // pred_check_branch
          %1409 = sbr.rel (%p1407) target = $region40
        $region39: #{tpu_custom_call.1} parent=27 // pred_region
          %s1410 = smul.u32 7, %s26
        $region40: #{tpu_custom_call.1} parent=27 // pred_fallthru
          _
      $region28: #{tpu_custom_call.1} parent=5 // pred_fallthru
        _
      %p1411 = scmp.le.s32.totalorder 2, %s14
      // Predicated region
      $region41: #{tpu_custom_call.1} parent=5 // pred_check
        %p1412 = pneg %p1411
      $region42: #{tpu_custom_call.1} parent=5 // pred_check_branch
        %1414 = sbr.rel (%p1412) target = $region44
      $region43: #{tpu_custom_call.1} parent=5 // pred_region
        %s1415 = ssub.s32 %s14, 2
        // Predicated region
        $region45: #{tpu_custom_call.1} parent=43 // pred_check
          %p1416 = pneg %p122
        $region46: #{tpu_custom_call.1} parent=43 // pred_check_branch
          %1418 = sbr.rel (%p1416) target = $region48
        $region47: #{tpu_custom_call.1} parent=43 // pred_region
          %s1419 = smul.u32 7, %s29
          %p1420 = scmp.lt.s32.totalorder %s27, 1
          %s1421 = scalar_select %p1420, %s27, 1
          %p1422 = scmp.lt.s32.totalorder %s1419, 13
          %s1423 = scalar_select %p1422, %s1419, 13
          %p1424 = scmp.lt.s32.totalorder %s28, 0
          %s1425 = scalar_select %p1424, %s28, 0
          %s1426 = smul.addr %s1423, 2
          %s1427 = sadd.s32 %s1425, %s1426
          %s1428 = smul.addr %s1421, 28
          %s1429 = sadd.s32 %s1427, %s1428
          %s1430 = smul.addr %s1429, 8
          %s1431 = scalar_lea.vmem %s2, %s1430
        $region48: #{tpu_custom_call.1} parent=43 // pred_fallthru
          _
      $region44: #{tpu_custom_call.1} parent=5 // pred_fallthru
        _
    $region6: #{tpu_custom_call.1} parent=1 // loop_footer
      %s18 = sadd.s32 1, %s14
    $region7: #{tpu_custom_call.1} parent=1 // loop_footer_branch
      %13 = sbr.rel target = $region3
    $region8: #{tpu_custom_call.1} parent=1 // loop_exit
      _
    %1432 = vsyncpa [#allocation3], 1
    %s1433 = scalar_lea.sflag [#allocation3], 1
    %1434 = vsyncpa %s1433, 1
    %1435 = vsyncpa [#allocation5], 1
    %s1436 = scalar_lea.sflag [#allocation5], 1
    %1437 = vsyncpa %s1436, 1

</llo_original>
